<compile_context>
chip_gen: v7x
topology: tpu7x:2x2x1
jax: 0.10.0
libtpu: 0.0.40
codegen_flags: <defaults>
</compile_context>

<pallas_src>
import functools

import jax
import jax.numpy as jnp
from jax.experimental import pallas as pl
from jax.experimental.pallas import tpu as pltpu

_LANES = 128
_SUBLANES = 8
_CHUNK_ROWS = 512              # 512 * 128 * 4B = 256 KiB per f32 input per compute chunk
_TM_MAX = 4096                 # 4096 * 128 * 4B = 2 MiB per f32 input block
_TARGET_BLOCKS = 4             # aim for >= 2 blocks per v7x TensorCore
_VMEM_LIMIT_BYTES = 32 * 1024 * 1024


def _round_up(a: int, m: int) -> int:
    return ((a + m - 1) // m) * m


def _rsum8(term):
    """(R, 128) -> (8, 128) partial sum; splits the sublane-tiled dim so the
    reduction is pure vreg-wise VPU adds (no cross-lane XLU work per step)."""
    r = term.shape[0]
    return jnp.sum(term.reshape(r // _SUBLANES, _SUBLANES, _LANES), axis=0)


def _block_partials(x_ref, t_ref, v_ref, *, block_rows, chunk_rows, rows_valid):
    """Accumulate the four (8,128) partials for one block, chunk by chunk.

    rows_valid: None (block fully valid) or a traced int32 scalar giving the
    number of valid rows in this block (row-level mask, no lane iota / no *128
    arithmetic, so no int32-overflow hazard for huge inputs).
    """
    num_chunks = block_rows // chunk_rows

    def body(c, carry):
        wi, ws, ts, bc = carry
        r0 = c * chunk_rows
        if not isinstance(r0, int):
            r0 = pl.multiple_of(r0, chunk_rows)
        x = x_ref[pl.ds(r0, chunk_rows), :].astype(jnp.float32)
        t = t_ref[pl.ds(r0, chunk_rows), :].astype(jnp.float32)
        v = v_ref[pl.ds(r0, chunk_rows), :].astype(jnp.float32)
        w = 1.0 - 2.0 * v

        if rows_valid is not None:
            # Overhang rows of the last (partial) block hold unspecified VMEM data
            # (possibly NaN); zero x, t, w before any transcendental / product.
            row = jax.lax.broadcasted_iota(jnp.int32, (chunk_rows, _LANES), 0)
            ok = row < (rows_valid - c * chunk_rows)
            x = jnp.where(ok, x, 0.0)
            t = jnp.where(ok, t, 0.0)
            w = jnp.where(ok, w, 0.0)

        p = jax.nn.sigmoid(x)
        pw = p * w

        # PyTorch binary_cross_entropy clamps the log terms at -100.
        log_p = jnp.maximum(jnp.log(p), -100.0)
        log_1mp = jnp.maximum(jnp.log1p(-p), -100.0)
        # Negated weighted BCE:  w * (log(1-p) + t * (log(p) - log(1-p)))
        # (negation folded into the host-side finalization).
        bce_neg = w * (log_1mp + t * (log_p - log_1mp))

        return (wi + _rsum8(pw * t),        # weighted intersection partial
                ws + _rsum8(pw),            # weighted input-sum partial
                ts + _rsum8(t * w),         # weighted target-sum partial
                bc + _rsum8(bce_neg))       # negated weighted BCE partial

    zero = jnp.zeros((_SUBLANES, _LANES), jnp.float32)
    init = (zero, zero, zero, zero)
    if num_chunks == 1:
        return body(0, init)
    return jax.lax.fori_loop(0, num_chunks, body, init, unroll=2)


def _partials_kernel(x_ref, t_ref, v_ref, out_ref, *, block_rows, chunk_rows,
                     total_rows, needs_mask):
    def emit(rows_valid):
        wi, ws, ts, bc = _block_partials(
            x_ref, t_ref, v_ref,
            block_rows=block_rows, chunk_rows=chunk_rows, rows_valid=rows_valid)
        out_ref[0, 0] = wi
        out_ref[0, 1] = ws
        out_ref[0, 2] = ts
        out_ref[0, 3] = bc

    if not needs_mask:
        emit(None)
        return

    # Only the last block pays for the row mask.
    i = pl.program_id(0)
    is_last = i == pl.num_programs(0) - 1

    @pl.when(jnp.logical_not(is_last))
    def _():
        emit(None)

    @pl.when(is_last)
    def _():
        emit(total_rows - i * block_rows)


def _partial_sums_jax(x, t, v):
    """Reference-path partial sums (used for the < 128-element ragged tail)."""
    x = x.astype(jnp.float32)
    t = t.astype(jnp.float32)
    w = 1.0 - 2.0 * v.astype(jnp.float32)
    p = jax.nn.sigmoid(x)
    log_p = jnp.maximum(jnp.log(p), -100.0)
    log_1mp = jnp.maximum(jnp.log1p(-p), -100.0)
    bce_neg = w * (log_1mp + t * (log_p - log_1mp))
    return jnp.stack([jnp.sum(p * w * t), jnp.sum(p * w),
                      jnp.sum(t * w), jnp.sum(bce_neg)]).astype(jnp.float32)


def weighted_dice_bce_loss(x, target, variance, gamma: float = 2.0, eps: float = 1e-6):
    # gamma / eps are module params but unused in the reference forward pass.
    n = x.size
    xf = jnp.ravel(x)
    tf = jnp.ravel(target)
    vf = jnp.ravel(variance)

    # Multiple-of-128 prefix handled by the kernel (free row-major reshape);
    # anything smaller than one (8,128) tile just goes through the JAX path.
    n_main = (n // _LANES) * _LANES
    if n_main // _LANES < _SUBLANES:
        n_main = 0
    rows = n_main // _LANES

    sums = jnp.zeros((4,), jnp.float32)

    if rows:
        if n_main != n:
            # TODO(synk): the prefix slice may still materialize a copy under XLA;
            # a fully copy-free ragged path would need manual element-level DMA.
            xm, tm_, vm = xf[:n_main], tf[:n_main], vf[:n_main]
        else:
            xm, tm_, vm = xf, tf, vf
        x2 = xm.reshape(rows, _LANES)   # free reshape of a contiguous buffer
        t2 = tm_.reshape(rows, _LANES)
        v2 = vm.reshape(rows, _LANES)

        # Block sizing: big enough to amortize per-step overhead, small enough to
        # (a) give >= _TARGET_BLOCKS blocks for the two v7x TensorCores and
        # (b) keep 3 inputs x 2 pipeline buffers + chunk temporaries under VMEM.
        block_rows = min(_TM_MAX, _round_up(pl.cdiv(rows, _TARGET_BLOCKS), _SUBLANES))
        if block_rows > _CHUNK_ROWS:
            block_rows = _round_up(block_rows, _CHUNK_ROWS)
        chunk_rows = min(_CHUNK_ROWS, block_rows)
        num_blocks = pl.cdiv(rows, block_rows)
        needs_mask = (num_blocks * block_rows) != rows

        kernel = functools.partial(
            _partials_kernel, block_rows=block_rows, chunk_rows=chunk_rows,
            total_rows=rows, needs_mask=needs_mask)

        partials = pl.pallas_call(
            kernel,
            out_shape=jax.ShapeDtypeStruct(
                (num_blocks, 4, _SUBLANES, _LANES), jnp.float32),
            grid_spec=pltpu.PrefetchScalarGridSpec(
                num_scalar_prefetch=0,
                grid=(num_blocks,),
                in_specs=[
                    pl.BlockSpec((block_rows, _LANES), lambda i: (i, 0)),
                    pl.BlockSpec((block_rows, _LANES), lambda i: (i, 0)),
                    pl.BlockSpec((block_rows, _LANES), lambda i: (i, 0)),
                ],
                out_specs=pl.BlockSpec(
                    (1, 4, _SUBLANES, _LANES), lambda i: (i, 0, 0, 0)),
            ),
            compiler_params=pltpu.CompilerParams(
                dimension_semantics=("parallel",),   # independent blocks: both v7x TCs
                vmem_limit_bytes=_VMEM_LIMIT_BYTES,
            ),
        )(x2, t2, v2)

        # Tiny (num_blocks, 4, 8, 128) tensor: tree-reduce outside the kernel.
        sums = sums + jnp.sum(partials, axis=(0, 2, 3))

    if n_main != n:
        sums = sums + _partial_sums_jax(xf[n_main:], tf[n_main:], vf[n_main:])

    wi, ws, ts, bneg = sums[0], sums[1], sums[2], sums[3]
    dice_loss = 1.0 - (2.0 * wi + 1.0) / (ws + ts + 1.0)
    bce_loss = -bneg / n
    return bce_loss + dice_loss


def _reference(x, target, variance):
    p = jax.nn.sigmoid(x).reshape(-1)
    t = target.reshape(-1)
    w = 1.0 - 2.0 * variance.reshape(-1)
    wi = jnp.sum(p * t * w)
    wis = jnp.sum(p * w)
    wts = jnp.sum(t * w)
    dice = 1.0 - (2.0 * wi + 1.0) / (wis + wts + 1.0)
    log_p = jnp.maximum(jnp.log(p), -100.0)
    log_1mp = jnp.maximum(jnp.log1p(-p), -100.0)
    bce = jnp.mean(w * -(t * log_p + (1.0 - t) * log_1mp))
    return bce + dice


if __name__ == "__main__":
    key = jax.random.PRNGKey(0)
    k1, k2, k3 = jax.random.split(key, 3)

    shape = (2, 4, 16, 16)  # B, C, H, W
    x = jax.random.normal(k1, shape, dtype=jnp.float32)                  # logits
    target = (jax.random.uniform(k2, shape) > 0.5).astype(jnp.float32)   # binary mask
    variance = jax.random.uniform(k3, shape, dtype=jnp.float32)          # in [0, 1)

    loss = jax.jit(weighted_dice_bce_loss)(x, target, variance)
    loss = jax.block_until_ready(loss)

    ref = _reference(x, target, variance)
    assert jnp.allclose(loss, ref, rtol=1e-5, atol=1e-5), (loss, ref)

    print("KERNEL_OK")
</pallas_src>

<mosaic_0001>
module attributes {stable_mosaic.version = 11 : i64} {
  func.func @_partials_kernel(%arg0: i32, %arg1: memref<8x128xf32, #tpu.memory_space<vmem>>, %arg2: memref<8x128xf32, #tpu.memory_space<vmem>>, %arg3: memref<8x128xf32, #tpu.memory_space<vmem>>, %arg4: memref<1x4x8x128xf32, #tpu.memory_space<vmem>>) attributes {dimension_semantics = [#tpu.dimension_semantics<parallel>], iteration_bounds = array<i64: 2>, scalar_prefetch = 0 : i64, scratch_operands = 0 : i64, tpu.core_type = #tpu.core_type<tc>, window_params = [{transform_indices = @transform_0, window_bounds = array<i64: 8, 128>}, {transform_indices = @transform_1, window_bounds = array<i64: 8, 128>}, {transform_indices = @transform_2, window_bounds = array<i64: 8, 128>}, {transform_indices = @transform_3, window_bounds = array<i64: 1, 4, 8, 128>}]} {
    %cst = arith.constant 0.000000e+00 : f32
    %0 = vector.broadcast %cst : f32 to vector<8x128xf32>
    %c0 = arith.constant 0 : index
    %c0_0 = arith.constant 0 : index
    %1 = vector.load %arg1[%c0, %c0_0] : memref<8x128xf32, #tpu.memory_space<vmem>>, vector<8x128xf32>
    %c0_1 = arith.constant 0 : index
    %c0_2 = arith.constant 0 : index
    %2 = vector.load %arg2[%c0_1, %c0_2] : memref<8x128xf32, #tpu.memory_space<vmem>>, vector<8x128xf32>
    %c0_3 = arith.constant 0 : index
    %c0_4 = arith.constant 0 : index
    %3 = vector.load %arg3[%c0_3, %c0_4] : memref<8x128xf32, #tpu.memory_space<vmem>>, vector<8x128xf32>
    %cst_5 = arith.constant 2.000000e+00 : f32
    %4 = vector.broadcast %cst_5 : f32 to vector<8x128xf32>
    %5 = arith.mulf %4, %3 : vector<8x128xf32>
    %cst_6 = arith.constant 1.000000e+00 : f32
    %6 = vector.broadcast %cst_6 : f32 to vector<8x128xf32>
    %7 = arith.subf %6, %5 : vector<8x128xf32>
    %8 = arith.negf %1 : vector<8x128xf32>
    %9 = math.exp %8 : vector<8x128xf32>
    %cst_7 = arith.constant 1.000000e+00 : f32
    %10 = vector.broadcast %cst_7 : f32 to vector<8x128xf32>
    %11 = arith.addf %10, %9 : vector<8x128xf32>
    %12 = arith.divf %10, %11 : vector<8x128xf32>
    %13 = arith.mulf %12, %7 : vector<8x128xf32>
    %14 = math.log %12 : vector<8x128xf32>
    %cst_8 = arith.constant -1.000000e+02 : f32
    %15 = vector.broadcast %cst_8 : f32 to vector<8x128xf32>
    %16 = arith.maximumf %14, %15 : vector<8x128xf32>
    %cst_9 = arith.constant 0.000000e+00 : f32
    %17 = vector.broadcast %cst_9 : f32 to vector<8x128xf32>
    %18 = arith.subf %17, %12 : vector<8x128xf32>
    %19 = math.log1p %18 : vector<8x128xf32>
    %cst_10 = arith.constant -1.000000e+02 : f32
    %20 = vector.broadcast %cst_10 : f32 to vector<8x128xf32>
    %21 = arith.maximumf %19, %20 : vector<8x128xf32>
    %22 = arith.subf %16, %21 : vector<8x128xf32>
    %23 = arith.mulf %2, %22 : vector<8x128xf32>
    %24 = arith.addf %21, %23 : vector<8x128xf32>
    %25 = arith.mulf %7, %24 : vector<8x128xf32>
    %26 = arith.mulf %13, %2 : vector<8x128xf32>
    %27 = vector.shape_cast %26 : vector<8x128xf32> to vector<1x8x128xf32>
    %cst_11 = arith.constant dense<0.000000e+00> : vector<8x128xf32>
    %28 = vector.multi_reduction <add>, %27, %cst_11 [0] : vector<1x8x128xf32> to vector<8x128xf32>
    %29 = arith.addf %0, %28 : vector<8x128xf32>
    %30 = vector.shape_cast %13 : vector<8x128xf32> to vector<1x8x128xf32>
    %cst_12 = arith.constant dense<0.000000e+00> : vector<8x128xf32>
    %31 = vector.multi_reduction <add>, %30, %cst_12 [0] : vector<1x8x128xf32> to vector<8x128xf32>
    %32 = arith.addf %0, %31 : vector<8x128xf32>
    %33 = arith.mulf %2, %7 : vector<8x128xf32>
    %34 = vector.shape_cast %33 : vector<8x128xf32> to vector<1x8x128xf32>
    %cst_13 = arith.constant dense<0.000000e+00> : vector<8x128xf32>
    %35 = vector.multi_reduction <add>, %34, %cst_13 [0] : vector<1x8x128xf32> to vector<8x128xf32>
    %36 = arith.addf %0, %35 : vector<8x128xf32>
    %37 = vector.shape_cast %25 : vector<8x128xf32> to vector<1x8x128xf32>
    %cst_14 = arith.constant dense<0.000000e+00> : vector<8x128xf32>
    %38 = vector.multi_reduction <add>, %37, %cst_14 [0] : vector<1x8x128xf32> to vector<8x128xf32>
    %39 = arith.addf %0, %38 : vector<8x128xf32>
    %c0_15 = arith.constant 0 : index
    %c0_16 = arith.constant 0 : index
    %c0_17 = arith.constant 0 : index
    %c0_18 = arith.constant 0 : index
    %40 = vector.load %arg4[%c0_15, %c0_16, %c0_17, %c0_18] : memref<1x4x8x128xf32, #tpu.memory_space<vmem>>, vector<1x1x8x128xf32>
    %41 = vector.shape_cast %40 : vector<1x1x8x128xf32> to vector<8x128xf32>
    %42 = vector.shape_cast %29 : vector<8x128xf32> to vector<1x1x8x128xf32>
    tpu.vector_store %arg4[%c0_15, %c0_16, %c0_17, %c0_18], %42 {strides = array<i32>} : memref<1x4x8x128xf32, #tpu.memory_space<vmem>>, vector<1x1x8x128xf32>,
    %c0_19 = arith.constant 0 : index
    %c1 = arith.constant 1 : index
    %c0_20 = arith.constant 0 : index
    %c0_21 = arith.constant 0 : index
    %43 = vector.load %arg4[%c0_19, %c1, %c0_20, %c0_21] : memref<1x4x8x128xf32, #tpu.memory_space<vmem>>, vector<1x1x8x128xf32>
    %44 = vector.shape_cast %43 : vector<1x1x8x128xf32> to vector<8x128xf32>
    %45 = vector.shape_cast %32 : vector<8x128xf32> to vector<1x1x8x128xf32>
    tpu.vector_store %arg4[%c0_19, %c1, %c0_20, %c0_21], %45 {strides = array<i32>} : memref<1x4x8x128xf32, #tpu.memory_space<vmem>>, vector<1x1x8x128xf32>,
    %c0_22 = arith.constant 0 : index
    %c2 = arith.constant 2 : index
    %c0_23 = arith.constant 0 : index
    %c0_24 = arith.constant 0 : index
    %46 = vector.load %arg4[%c0_22, %c2, %c0_23, %c0_24] : memref<1x4x8x128xf32, #tpu.memory_space<vmem>>, vector<1x1x8x128xf32>
    %47 = vector.shape_cast %46 : vector<1x1x8x128xf32> to vector<8x128xf32>
    %48 = vector.shape_cast %36 : vector<8x128xf32> to vector<1x1x8x128xf32>
    tpu.vector_store %arg4[%c0_22, %c2, %c0_23, %c0_24], %48 {strides = array<i32>} : memref<1x4x8x128xf32, #tpu.memory_space<vmem>>, vector<1x1x8x128xf32>,
    %c0_25 = arith.constant 0 : index
    %c3 = arith.constant 3 : index
    %c0_26 = arith.constant 0 : index
    %c0_27 = arith.constant 0 : index
    %49 = vector.load %arg4[%c0_25, %c3, %c0_26, %c0_27] : memref<1x4x8x128xf32, #tpu.memory_space<vmem>>, vector<1x1x8x128xf32>
    %50 = vector.shape_cast %49 : vector<1x1x8x128xf32> to vector<8x128xf32>
    %51 = vector.shape_cast %39 : vector<8x128xf32> to vector<1x1x8x128xf32>
    tpu.vector_store %arg4[%c0_25, %c3, %c0_26, %c0_27], %51 {strides = array<i32>} : memref<1x4x8x128xf32, #tpu.memory_space<vmem>>, vector<1x1x8x128xf32>,
    return
  }
  func.func @transform_0(%arg0: i32) -> (i32, i32) {
    %c0_i32 = arith.constant 0 : i32
    %c0_i32_0 = arith.constant 0 : i32
    return %arg0, %c0_i32 : i32, i32
  }
  func.func @transform_1(%arg0: i32) -> (i32, i32) {
    %c0_i32 = arith.constant 0 : i32
    %c0_i32_0 = arith.constant 0 : i32
    return %arg0, %c0_i32 : i32, i32
  }
  func.func @transform_2(%arg0: i32) -> (i32, i32) {
    %c0_i32 = arith.constant 0 : i32
    %c0_i32_0 = arith.constant 0 : i32
    return %arg0, %c0_i32 : i32, i32
  }
  func.func @transform_3(%arg0: i32) -> (i32, i32, i32, i32) {
    %c0_i32 = arith.constant 0 : i32
    %c0_i32_0 = arith.constant 0 : i32
    %c0_i32_1 = arith.constant 0 : i32
    %c0_i32_2 = arith.constant 0 : i32
    return %arg0, %c0_i32, %c0_i32_0, %c0_i32_1 : i32, i32, i32, i32
  }
}

</mosaic_0001>

<llo_original>
// kernel: weighted_dice_bce_loss.1
$region0: #{weighted_dice_bce_loss.1}
  #allocation0 [shape = 'u32[]', space=smem, size = 0x4, offset = 0x4, fixed_abs, tag = 'smem constant byte address 0x4 - core index']
  #allocation1 [shape = 'u32[144,128]{1,0:T(1,128)}', space=vmem, size = 0x12000, scoped, tag = 'internal scratch']
  %s0 = inlined_call_operand.vmem [shape: f32[16,128], index: 0, kind: input, shape index: {}]
  %s1 = inlined_call_operand.vmem [shape: f32[16,128], index: 1, kind: input, shape index: {}]
  %s2 = inlined_call_operand.vmem [shape: f32[16,128], index: 2, kind: input, shape index: {}]
  %s3 = inlined_call_operand.vmem [shape: f32[2,4,8,128], index: 3, kind: output, shape index: {}]
  %s4 = sld [smem:[#allocation0]]
  $region45: #{weighted_dice_bce_loss.1} parent=0
    _
  %s6 = ssub.s32 1, %s4
  %s7 = scalar_select 0, %s6, %s4
  loop: start=0, step=1, limit=4
  $region2: #{weighted_dice_bce_loss.1} parent=0 // loop_pre_header
    _
  $region3: #{weighted_dice_bce_loss.1} parent=0 // loop_header
    %s9 = sphi 0, %s13
    %p10 = scmp.ge.s32.totalorder %s9, 4
    %s19 = sphi 0, %s21
    %s22 = sphi 0, %s19
    %s23 = sphi 0, %s22
    %s39 = sphi 0, %s23
    %s45 = sphi 0, %s47
    %s48 = sphi 0, %s45
    %s49 = sphi 0, %s48
    %s65 = sphi 0, %s49
    %s71 = sphi 0, %s73
    %s74 = sphi 0, %s71
    %s75 = sphi 0, %s74
    %s91 = sphi 0, %s75
    %s97 = sphi 0, %s99
    %s100 = sphi 0, %s97
    %s101 = sphi 0, %s100
    %s117 = sphi 0, %s101
  $region4: #{weighted_dice_bce_loss.1} parent=0 // loop_header_branch
    %12 = sbr.rel (%p10) target = $region8
  $region5: #{weighted_dice_bce_loss.1} parent=0 // loop_body
    %s14 = ssub.s32 %s9, 1
    %s15 = ssub.s32 %s9, 2
    %s16 = sadd.s32 %s9, 1
    %s17 = ssub.s32 %s9, %s16
    %p18 = scmp.eq.s32.totalorder %s17, 0
    %s20 = sadd.s32 %s19, 1
    %s21 = scalar_select %p18, %s19, %s20
    %p24 = pneg %p18
    %p25 = scmp.eq.s32.totalorder %s9, 1
    %p26 = por %p24, %p25
    %p27 = scmp.ne.s32.totalorder %s19, %s22
    %p28 = scmp.eq.s32.totalorder %s9, 0
    %p29 = por %p27, %p28
    %p30 = scmp.ne.s32.totalorder %s19, %s22
    %p31 = scmp.eq.s32.totalorder %s14, 1
    %p32 = por %p30, %p31
    %p33 = scmp.ne.s32.totalorder %s22, %s23
    %p34 = scmp.eq.s32.totalorder %s14, 0
    %p35 = por %p33, %p34
    %p36 = scmp.ne.s32.totalorder %s22, %s23
    %p37 = scmp.eq.s32.totalorder %s15, 1
    %p38 = por %p36, %p37
    %p40 = scmp.ne.s32.totalorder %s23, %s39
    %p41 = scmp.eq.s32.totalorder %s15, 0
    %p42 = por %p40, %p41
    %s43 = ssub.s32 %s9, %s16
    %p44 = scmp.eq.s32.totalorder %s43, 0
    %s46 = sadd.s32 %s45, 1
    %s47 = scalar_select %p44, %s45, %s46
    %p50 = pneg %p44
    %p51 = scmp.eq.s32.totalorder %s9, 1
    %p52 = por %p50, %p51
    %p53 = scmp.ne.s32.totalorder %s45, %s48
    %p54 = scmp.eq.s32.totalorder %s9, 0
    %p55 = por %p53, %p54
    %p56 = scmp.ne.s32.totalorder %s45, %s48
    %p57 = scmp.eq.s32.totalorder %s14, 1
    %p58 = por %p56, %p57
    %p59 = scmp.ne.s32.totalorder %s48, %s49
    %p60 = scmp.eq.s32.totalorder %s14, 0
    %p61 = por %p59, %p60
    %p62 = scmp.ne.s32.totalorder %s48, %s49
    %p63 = scmp.eq.s32.totalorder %s15, 1
    %p64 = por %p62, %p63
    %p66 = scmp.ne.s32.totalorder %s49, %s65
    %p67 = scmp.eq.s32.totalorder %s15, 0
    %p68 = por %p66, %p67
    %s69 = ssub.s32 %s9, %s16
    %p70 = scmp.eq.s32.totalorder %s69, 0
    %s72 = sadd.s32 %s71, 1
    %s73 = scalar_select %p70, %s71, %s72
    %p76 = pneg %p70
    %p77 = scmp.eq.s32.totalorder %s9, 1
    %p78 = por %p76, %p77
    %p79 = scmp.ne.s32.totalorder %s71, %s74
    %p80 = scmp.eq.s32.totalorder %s9, 0
    %p81 = por %p79, %p80
    %p82 = scmp.ne.s32.totalorder %s71, %s74
    %p83 = scmp.eq.s32.totalorder %s14, 1
    %p84 = por %p82, %p83
    %p85 = scmp.ne.s32.totalorder %s74, %s75
    %p86 = scmp.eq.s32.totalorder %s14, 0
    %p87 = por %p85, %p86
    %p88 = scmp.ne.s32.totalorder %s74, %s75
    %p89 = scmp.eq.s32.totalorder %s15, 1
    %p90 = por %p88, %p89
    %p92 = scmp.ne.s32.totalorder %s75, %s91
    %p93 = scmp.eq.s32.totalorder %s15, 0
    %p94 = por %p92, %p93
    %s95 = ssub.s32 %s9, %s16
    %p96 = scmp.eq.s32.totalorder %s95, 0
    %s98 = sadd.s32 %s97, 1
    %s99 = scalar_select %p96, %s97, %s98
    %p102 = pneg %p96
    %p103 = scmp.eq.s32.totalorder %s9, 1
    %p104 = por %p102, %p103
    %p105 = scmp.ne.s32.totalorder %s97, %s100
    %p106 = scmp.eq.s32.totalorder %s9, 0
    %p107 = por %p105, %p106
    %p108 = scmp.ne.s32.totalorder %s97, %s100
    %p109 = scmp.eq.s32.totalorder %s14, 1
    %p110 = por %p108, %p109
    %p111 = scmp.ne.s32.totalorder %s100, %s101
    %p112 = scmp.eq.s32.totalorder %s14, 0
    %p113 = por %p111, %p112
    %p114 = scmp.ne.s32.totalorder %s100, %s101
    %p115 = scmp.eq.s32.totalorder %s15, 1
    %p116 = por %p114, %p115
    %p118 = scmp.ne.s32.totalorder %s101, %s117
    %p119 = scmp.eq.s32.totalorder %s15, 0
    %p120 = por %p118, %p119
    %p121 = scmp.le.s32.totalorder 1, %s9
    %p122 = scmp.lt.s32.totalorder %s9, 3
    %p123 = pnand %p121, %p122
    %p124 = pneg %p123
    // Predicated region
    $region9: #{weighted_dice_bce_loss.1} parent=5 // pred_check
      _
    $region10: #{weighted_dice_bce_loss.1} parent=5 // pred_check_branch
      %126 = sbr.rel (%p123) target = $region12
    $region11: #{weighted_dice_bce_loss.1} parent=5 // pred_region
      %s127 = ssub.s32 %s9, 1
    $region12: #{weighted_dice_bce_loss.1} parent=5 // pred_fallthru
      _
    %p128 = scmp.lt.s32.totalorder %s9, 2
    // Predicated region
    $region13: #{weighted_dice_bce_loss.1} parent=5 // pred_check
      %p129 = pneg %p128
    $region14: #{weighted_dice_bce_loss.1} parent=5 // pred_check_branch
      %131 = sbr.rel (%p129) target = $region16
    $region15: #{weighted_dice_bce_loss.1} parent=5 // pred_region
      // Predicated region
      $region17: #{weighted_dice_bce_loss.1} parent=15 // pred_check
        %p132 = pneg %p29
      $region18: #{weighted_dice_bce_loss.1} parent=15 // pred_check_branch
        %134 = sbr.rel (%p132) target = $region20
      $region19: #{weighted_dice_bce_loss.1} parent=15 // pred_region
        %p135 = scmp.lt.s32.totalorder %s9, 1
        %s136 = scalar_select %p135, %s9, 1
        %s137 = smul.addr %s136, 8
        %s138 = scalar_lea.vmem %s0, %s137
      $region20: #{weighted_dice_bce_loss.1} parent=15 // pred_fallthru
        _
      // Predicated region
      $region21: #{weighted_dice_bce_loss.1} parent=15 // pred_check
        %p139 = pneg %p55
      $region22: #{weighted_dice_bce_loss.1} parent=15 // pred_check_branch
        %141 = sbr.rel (%p139) target = $region24
      $region23: #{weighted_dice_bce_loss.1} parent=15 // pred_region
        %p142 = scmp.lt.s32.totalorder %s9, 1
        %s143 = scalar_select %p142, %s9, 1
        %s144 = smul.addr %s143, 8
        %s145 = scalar_lea.vmem %s1, %s144
      $region24: #{weighted_dice_bce_loss.1} parent=15 // pred_fallthru
        _
      // Predicated region
      $region25: #{weighted_dice_bce_loss.1} parent=15 // pred_check
        %p146 = pneg %p81
      $region26: #{weighted_dice_bce_loss.1} parent=15 // pred_check_branch
        %148 = sbr.rel (%p146) target = $region28
      $region27: #{weighted_dice_bce_loss.1} parent=15 // pred_region
        %p149 = scmp.lt.s32.totalorder %s9, 1
        %s150 = scalar_select %p149, %s9, 1
        %s151 = smul.addr %s150, 8
        %s152 = scalar_lea.vmem %s2, %s151
      $region28: #{weighted_dice_bce_loss.1} parent=15 // pred_fallthru
        _
    $region16: #{weighted_dice_bce_loss.1} parent=5 // pred_fallthru
      _
    %p153 = scmp.le.s32.totalorder 1, %s9
    %p154 = scmp.lt.s32.totalorder %s9, 3
    %p155 = pnand %p153, %p154
    %p156 = pneg %p155
    // Predicated region
    $region29: #{weighted_dice_bce_loss.1} parent=5 // pred_check
      _
    $region30: #{weighted_dice_bce_loss.1} parent=5 // pred_check_branch
      %158 = sbr.rel (%p155) target = $region32
    $region31: #{weighted_dice_bce_loss.1} parent=5 // pred_region
      %s159 = ssub.s32 %s9, 1
      %p160 = scmp.lt.s32.totalorder %s14, 1
      %s161 = scalar_select %p160, %s14, 1
      %s162 = smul.addr %s161, 8
      %s163 = scalar_lea.vmem %s0, %s162
      %p164 = pneg %p35
      %p165 = pneg %p32
      %p166 = scmp.lt.s32.totalorder %s14, 1
      %s167 = scalar_select %p166, %s14, 1
      %s168 = smul.addr %s167, 8
      %s169 = scalar_lea.vmem %s1, %s168
      %p170 = pneg %p61
      %p171 = pneg %p58
      %p172 = scmp.lt.s32.totalorder %s14, 1
      %s173 = scalar_select %p172, %s14, 1
      %s174 = smul.addr %s173, 8
      %s175 = scalar_lea.vmem %s2, %s174
      %p176 = pneg %p87
      %p177 = pneg %p84
      %p178 = pneg %p113
      %p179 = pneg %p110
      %p180 = scmp.lt.s32.totalorder %s14, 1
      %s181 = scalar_select %p180, %s14, 1
      %s182 = smul.addr %s181, 4
      %s183 = smul.addr %s182, 8
      %s184 = scalar_lea.vmem %s3, %s183
      %p185 = scmp.lt.s32.totalorder %s14, 1
      %s186 = scalar_select %p185, %s14, 1
      %s187 = smul.addr %s186, 8
      %s188 = scalar_lea.vmem %s0, %s187
      %p189 = scmp.lt.s32.totalorder %s14, 1
      %s190 = scalar_select %p189, %s14, 1
      %s191 = smul.addr %s190, 8
      %s192 = scalar_lea.vmem %s1, %s191
      %p193 = scmp.lt.s32.totalorder %s14, 1
      %s194 = scalar_select %p193, %s14, 1
      %s195 = smul.addr %s194, 8
      %s196 = scalar_lea.vmem %s2, %s195
      %p197 = scmp.lt.s32.totalorder %s14, 1
      %s198 = scalar_select %p197, %s14, 1
      %s199 = smul.addr %s198, 4
      %s200 = smul.addr %s199, 8
      %s201 = scalar_lea.vmem %s3, %s200
      %v202 = vld [vmem:[%s188] sm:$0xff]
      %v203 = vld [vmem:[%s192] sm:$0xff]
      %v204 = vld [vmem:[%s196] sm:$0xff]
      %v205 = vmul.f32 %v204, 2.0
      %v206 = vsub.f32 1.0, %v205
      %v207 = vxor.u32 %v202, 2147483648
      %v208 = vmul.f32 %v207, 1.442695
      %v209 = vpow.pop %v208
      %v210 = vadd.f32 %v209, 1.0
      %v211 = vrcp.pop %v210
      %v212 = vmul.f32 1.0, %v211
      %v213 = vmul.f32 %v212, %v206
      %v214 = vlog2.pop %v212
      %v215 = vmul.f32 %v214, 0.6931472
      %v216 = vmax.f32 %v215, -100.0
      %v217 = vsub.f32 0.0, %v212
      %v218 = vadd.f32 %v217, 1.0
      %v219 = vlog2.pop %v218
      %v220 = vmul.f32 %v219, 0.6931472
      %v221 = vmul.f32 -0.5, %v217
      %v222 = vadd.f32 %v221, 1.0
      %v223 = vmul.f32 %v222, %v217
      %v224 = vand.u32 2147483647, %v217
      %vm225 = vcmp.lt.f32.partialorder %v224, 0.0004427343
      %v226 = vsel %vm225, %v223, %v220
      %v227 = vmax.f32 %v226, -100.0
      %v228 = vsub.f32 %v216, %v227
      %v229 = vmul.f32 %v203, %v228
      %v230 = vadd.f32 %v227, %v229
      %v231 = vmul.f32 %v206, %v230
      %v232 = vmul.f32 %v213, %v203
      %v233 = vadd.f32 %v232, 0.0
      %v234 = vadd.f32 %v233, 0.0
      %v235 = vadd.f32 %v213, 0.0
      %v236 = vadd.f32 %v235, 0.0
      %v237 = vmul.f32 %v203, %v206
      %v238 = vadd.f32 %v237, 0.0
      %v239 = vadd.f32 %v238, 0.0
      %v240 = vadd.f32 %v231, 0.0
      %v241 = vadd.f32 %v240, 0.0
      %242 = vst [vmem:[%s201] sm:$0xff] %v234
      %s243 = scalar_lea.vmem %s201, 8
      %244 = vst [vmem:[%s243] sm:$0xff] %v236
      %s245 = scalar_lea.vmem %s201, 16
      %246 = vst [vmem:[%s245] sm:$0xff] %v239
      %s247 = scalar_lea.vmem %s201, 24
      %248 = vst [vmem:[%s247] sm:$0xff] %v241
      %p249 = scmp.lt.s32.totalorder %s14, 1
      %s250 = scalar_select %p249, %s14, 1
      %s251 = smul.addr %s250, 4
      %s252 = smul.addr %s251, 8
      %s253 = scalar_lea.vmem %s3, %s252
      // Predicated region
      $region33: #{weighted_dice_bce_loss.1} parent=31 // pred_check
        %p254 = pneg %p110
      $region34: #{weighted_dice_bce_loss.1} parent=31 // pred_check_branch
        %256 = sbr.rel (%p254) target = $region36
      $region35: #{weighted_dice_bce_loss.1} parent=31 // pred_region
        _
      $region36: #{weighted_dice_bce_loss.1} parent=31 // pred_fallthru
        _
    $region32: #{weighted_dice_bce_loss.1} parent=5 // pred_fallthru
      _
    %p257 = scmp.le.s32.totalorder 2, %s9
    // Predicated region
    $region37: #{weighted_dice_bce_loss.1} parent=5 // pred_check
      %p258 = pneg %p257
    $region38: #{weighted_dice_bce_loss.1} parent=5 // pred_check_branch
      %260 = sbr.rel (%p258) target = $region40
    $region39: #{weighted_dice_bce_loss.1} parent=5 // pred_region
      %s261 = ssub.s32 %s9, 2
      // Predicated region
      $region41: #{weighted_dice_bce_loss.1} parent=39 // pred_check
        %p262 = pneg %p116
      $region42: #{weighted_dice_bce_loss.1} parent=39 // pred_check_branch
        %264 = sbr.rel (%p262) target = $region44
      $region43: #{weighted_dice_bce_loss.1} parent=39 // pred_region
        %p265 = scmp.lt.s32.totalorder %s15, 1
        %s266 = scalar_select %p265, %s15, 1
        %s267 = smul.addr %s266, 4
        %s268 = smul.addr %s267, 8
        %s269 = scalar_lea.vmem %s3, %s268
      $region44: #{weighted_dice_bce_loss.1} parent=39 // pred_fallthru
        _
    $region40: #{weighted_dice_bce_loss.1} parent=5 // pred_fallthru
      _
  $region6: #{weighted_dice_bce_loss.1} parent=0 // loop_footer
    %s13 = sadd.s32 1, %s9
  $region7: #{weighted_dice_bce_loss.1} parent=0 // loop_footer_branch
    %8 = sbr.rel target = $region3
  $region8: #{weighted_dice_bce_loss.1} parent=0 // loop_exit
    _

</llo_original>
